<compile_context>
chip_gen: v5e
topology: v5e:2x2
jax: 0.10.0
libtpu: 0.0.40
codegen_flags: <defaults>
</compile_context>

<pallas_src>
import jax
import jax.numpy as jnp
from jax.experimental import pallas as pl
from jax.experimental.pallas import tpu as pltpu

LANE = 128


def _round_up(n, m):
    return ((n + m - 1) // m) * m


def word2vec_kernel(ids_ref, w1_ref, b1_ref, w2_ref, b2_ref, o_ref, h_ref):
    """Single grid step: gather B embedding rows, then one batched fc2 matmul."""
    B = h_ref.shape[0]
    V = w1_ref.shape[0]

    # fc1 for a one-hot input == gather of one W1 row.  B is tiny and static,
    # so a plain Python loop of leading-axis dynamic reads assembles the LHS
    # into the (B, Ep) VMEM scratch.
    for b in range(B):
        tok = jnp.clip(ids_ref[b], 0, V - 1)          # guard out-of-range ids
        h_ref[b:b + 1, :] = w1_ref[tok]               # (1, Ep) row copy

    h = h_ref[...] + b1_ref[...]                      # (B, Ep) + (1, Ep) bias

    # fc2: one batched (B, Ep) @ (Ep, Vp) on the MXU, f32 accumulation,
    # then one lane/sublane-dense (B, Vp) store.
    logits = jnp.dot(h, w2_ref[...], preferred_element_type=jnp.float32)
    o_ref[...] = (logits + b2_ref[...]).astype(o_ref.dtype)


def prepare_params(w1, b1, w2, b2):
    """One-time weight prep (transpose + zero-pad to lane-dense shapes).

    w1: (E, V) torch nn.Linear layout, b1: (E,), w2: (V, E), b2: (V,).
    Returns W1 as a row-gatherable (V, 1, Ep) table plus padded fc2 operands.
    """
    E, V = w1.shape
    Ep, Vp = _round_up(E, LANE), _round_up(V, LANE)
    w1_t = jnp.asarray(w1, jnp.float32).T                               # (V, E)
    w1_rows = jnp.zeros((V, 1, Ep), jnp.float32).at[:, 0, :E].set(w1_t)
    b1_p = jnp.zeros((1, Ep), jnp.float32).at[0, :E].set(jnp.asarray(b1, jnp.float32))
    w2_p = jnp.zeros((Ep, Vp), jnp.float32).at[:E, :V].set(jnp.asarray(w2, jnp.float32).T)
    b2_p = jnp.zeros((1, Vp), jnp.float32).at[0, :V].set(jnp.asarray(b2, jnp.float32))
    return w1_rows, b1_p, w2_p, b2_p


@jax.jit
def word2vec_forward_ids(ids, w1_rows, b1_p, w2_p, b2_p):
    """Fast path: forward(one_hot(ids)) without materializing the one-hot."""
    ids = jnp.asarray(ids, jnp.int32)
    B = ids.shape[0]
    V, _, Ep = w1_rows.shape
    Vp = w2_p.shape[1]

    grid_spec = pltpu.PrefetchScalarGridSpec(
        num_scalar_prefetch=1,            # ids -> SMEM, read in-kernel
        grid=(1,),                        # single step: whole batch at once
        in_specs=[
            pl.BlockSpec((V, 1, Ep), lambda i, idr: (0, 0, 0)),   # W1 table (resident)
            pl.BlockSpec((1, Ep), lambda i, idr: (0, 0)),         # b1
            pl.BlockSpec((Ep, Vp), lambda i, idr: (0, 0)),        # W2
            pl.BlockSpec((1, Vp), lambda i, idr: (0, 0)),         # b2
        ],
        out_specs=pl.BlockSpec((B, Vp), lambda i, idr: (0, 0)),   # one dense store
        scratch_shapes=[pltpu.VMEM((B, Ep), jnp.float32)],        # gathered LHS
    )

    out_padded = pl.pallas_call(
        word2vec_kernel,
        out_shape=jax.ShapeDtypeStruct((B, Vp), jnp.float32),
        grid_spec=grid_spec,
        compiler_params=pltpu.CompilerParams(
            dimension_semantics=("arbitrary",)),
    )(ids, w1_rows, b1_p, w2_p, b2_p)

    # Slice the padded lane-dense logits back to the logical (B, V).
    # (Callers that can mask may prefer to consume the padded slab directly.)
    return out_padded[:, :V]


@jax.jit
def word2vec_forward(x, w1_rows, b1_p, w2_p, b2_p):
    """Drop-in forward(x) for the module's one-hot inputs.

    Prefer word2vec_forward_ids: the argmax below is an extra XLA launch over
    [B, V] that the ids path avoids entirely.
    """
    # TODO(synk): arbitrary (non one-hot) x would need the dense [B,V]x[V,E]
    # fc1 path; the module only ever feeds one-hot rows through forward().
    ids = jnp.argmax(x, axis=-1).astype(jnp.int32)
    return word2vec_forward_ids(ids, w1_rows, b1_p, w2_p, b2_p)


def reference_forward(x, w1, b1, w2, b2):
    h = x @ w1.T + b1
    return h @ w2.T + b2


if __name__ == "__main__":
    # Mirrors Word2Vec(vocabulary, tokens, emb_size=30): vocab=50, emb=30,
    # batch of 8 center-word one-hot vectors.
    VOCAB, EMB, BATCH = 50, 30, 8

    key = jax.random.PRNGKey(0)
    k_ids, k_w1, k_b1, k_w2, k_b2 = jax.random.split(key, 5)

    # Deterministic "Linear" parameters (torch layout: (out, in)).
    w1 = jax.random.uniform(k_w1, (EMB, VOCAB), jnp.float32, -0.1, 0.1)
    b1 = jax.random.uniform(k_b1, (EMB,), jnp.float32, -0.1, 0.1)
    w2 = jax.random.uniform(k_w2, (VOCAB, EMB), jnp.float32, -0.1, 0.1)
    b2 = jax.random.uniform(k_b2, (VOCAB,), jnp.float32, -0.1, 0.1)

    ids = jax.random.randint(k_ids, (BATCH,), 0, VOCAB, dtype=jnp.int32)
    x = jax.nn.one_hot(ids, VOCAB, dtype=jnp.float32)

    # Hoisted, one-time parameter prep (transpose + pad).
    params = prepare_params(w1, b1, w2, b2)

    out_ids = jax.block_until_ready(word2vec_forward_ids(ids, *params))
    out_onehot = jax.block_until_ready(word2vec_forward(x, *params))

    ref = reference_forward(x, w1, b1, w2, b2)

    assert out_ids.shape == (BATCH, VOCAB)
    assert out_onehot.shape == (BATCH, VOCAB)
    assert jnp.allclose(out_ids, ref, atol=1e-5, rtol=1e-5), "ids path mismatch"
    assert jnp.allclose(out_onehot, ref, atol=1e-5, rtol=1e-5), "one-hot path mismatch"

    print("KERNEL_OK")
</pallas_src>

<mosaic_0001>
module attributes {stable_mosaic.version = 11 : i64} {
  func.func @word2vec_kernel(%arg0: i32, %arg1: memref<8xi32, #tpu.memory_space<smem>>, %arg2: memref<50x1x128xf32, #tpu.memory_space<vmem>>, %arg3: memref<1x128xf32, #tpu.memory_space<vmem>>, %arg4: memref<128x128xf32, #tpu.memory_space<vmem>>, %arg5: memref<1x128xf32, #tpu.memory_space<vmem>>, %arg6: memref<8x128xf32, #tpu.memory_space<vmem>>, %arg7: memref<8x128xf32, #tpu.memory_space<vmem>>) attributes {dimension_semantics = [#tpu.dimension_semantics<arbitrary>], iteration_bounds = array<i64: 1>, scalar_prefetch = 1 : i64, scratch_operands = 1 : i64, tpu.core_type = #tpu.core_type<tc>, window_params = [{pipeline_mode = #tpu.pipeline_mode<synchronous>, transform_indices = @transform_0, window_bounds = array<i64: 50, 1, 128>}, {pipeline_mode = #tpu.pipeline_mode<synchronous>, transform_indices = @transform_1, window_bounds = array<i64: 1, 128>}, {pipeline_mode = #tpu.pipeline_mode<synchronous>, transform_indices = @transform_2, window_bounds = array<i64: 128, 128>}, {pipeline_mode = #tpu.pipeline_mode<synchronous>, transform_indices = @transform_3, window_bounds = array<i64: 1, 128>}, {pipeline_mode = #tpu.pipeline_mode<synchronous>, transform_indices = @transform_4, window_bounds = array<i64: 8, 128>}]} {
    %c0 = arith.constant 0 : index
    %0 = memref.load %arg1[%c0] : memref<8xi32, #tpu.memory_space<smem>>
    %c0_i32 = arith.constant 0 : i32
    %c49_i32 = arith.constant 49 : i32
    %1 = arith.maxsi %c0_i32, %0 : i32
    %2 = arith.minsi %c49_i32, %1 : i32
    %3 = arith.index_cast %2 : i32 to index
    %c0_0 = arith.constant 0 : index
    %c0_1 = arith.constant 0 : index
    %4 = vector.load %arg2[%3, %c0_0, %c0_1] : memref<50x1x128xf32, #tpu.memory_space<vmem>>, vector<1x1x128xf32>
    %5 = vector.shape_cast %4 : vector<1x1x128xf32> to vector<1x128xf32>
    %c0_2 = arith.constant 0 : index
    %c0_3 = arith.constant 0 : index
    %6 = vector.load %arg7[%c0_2, %c0_3] : memref<8x128xf32, #tpu.memory_space<vmem>>, vector<1x128xf32>
    tpu.vector_store %arg7[%c0_2, %c0_3], %5 {strides = array<i32>} : memref<8x128xf32, #tpu.memory_space<vmem>>, vector<1x128xf32>,
    %c1 = arith.constant 1 : index
    %7 = memref.load %arg1[%c1] : memref<8xi32, #tpu.memory_space<smem>>
    %c0_i32_4 = arith.constant 0 : i32
    %c49_i32_5 = arith.constant 49 : i32
    %8 = arith.maxsi %c0_i32_4, %7 : i32
    %9 = arith.minsi %c49_i32_5, %8 : i32
    %10 = arith.index_cast %9 : i32 to index
    %c0_6 = arith.constant 0 : index
    %c0_7 = arith.constant 0 : index
    %11 = vector.load %arg2[%10, %c0_6, %c0_7] : memref<50x1x128xf32, #tpu.memory_space<vmem>>, vector<1x1x128xf32>
    %12 = vector.shape_cast %11 : vector<1x1x128xf32> to vector<1x128xf32>
    %c1_8 = arith.constant 1 : index
    %c0_9 = arith.constant 0 : index
    %13 = vector.load %arg7[%c1_8, %c0_9] : memref<8x128xf32, #tpu.memory_space<vmem>>, vector<1x128xf32>
    tpu.vector_store %arg7[%c1_8, %c0_9], %12 {strides = array<i32>} : memref<8x128xf32, #tpu.memory_space<vmem>>, vector<1x128xf32>,
    %c2 = arith.constant 2 : index
    %14 = memref.load %arg1[%c2] : memref<8xi32, #tpu.memory_space<smem>>
    %c0_i32_10 = arith.constant 0 : i32
    %c49_i32_11 = arith.constant 49 : i32
    %15 = arith.maxsi %c0_i32_10, %14 : i32
    %16 = arith.minsi %c49_i32_11, %15 : i32
    %17 = arith.index_cast %16 : i32 to index
    %c0_12 = arith.constant 0 : index
    %c0_13 = arith.constant 0 : index
    %18 = vector.load %arg2[%17, %c0_12, %c0_13] : memref<50x1x128xf32, #tpu.memory_space<vmem>>, vector<1x1x128xf32>
    %19 = vector.shape_cast %18 : vector<1x1x128xf32> to vector<1x128xf32>
    %c2_14 = arith.constant 2 : index
    %c0_15 = arith.constant 0 : index
    %20 = vector.load %arg7[%c2_14, %c0_15] : memref<8x128xf32, #tpu.memory_space<vmem>>, vector<1x128xf32>
    tpu.vector_store %arg7[%c2_14, %c0_15], %19 {strides = array<i32>} : memref<8x128xf32, #tpu.memory_space<vmem>>, vector<1x128xf32>,
    %c3 = arith.constant 3 : index
    %21 = memref.load %arg1[%c3] : memref<8xi32, #tpu.memory_space<smem>>
    %c0_i32_16 = arith.constant 0 : i32
    %c49_i32_17 = arith.constant 49 : i32
    %22 = arith.maxsi %c0_i32_16, %21 : i32
    %23 = arith.minsi %c49_i32_17, %22 : i32
    %24 = arith.index_cast %23 : i32 to index
    %c0_18 = arith.constant 0 : index
    %c0_19 = arith.constant 0 : index
    %25 = vector.load %arg2[%24, %c0_18, %c0_19] : memref<50x1x128xf32, #tpu.memory_space<vmem>>, vector<1x1x128xf32>
    %26 = vector.shape_cast %25 : vector<1x1x128xf32> to vector<1x128xf32>
    %c3_20 = arith.constant 3 : index
    %c0_21 = arith.constant 0 : index
    %27 = vector.load %arg7[%c3_20, %c0_21] : memref<8x128xf32, #tpu.memory_space<vmem>>, vector<1x128xf32>
    tpu.vector_store %arg7[%c3_20, %c0_21], %26 {strides = array<i32>} : memref<8x128xf32, #tpu.memory_space<vmem>>, vector<1x128xf32>,
    %c4 = arith.constant 4 : index
    %28 = memref.load %arg1[%c4] : memref<8xi32, #tpu.memory_space<smem>>
    %c0_i32_22 = arith.constant 0 : i32
    %c49_i32_23 = arith.constant 49 : i32
    %29 = arith.maxsi %c0_i32_22, %28 : i32
    %30 = arith.minsi %c49_i32_23, %29 : i32
    %31 = arith.index_cast %30 : i32 to index
    %c0_24 = arith.constant 0 : index
    %c0_25 = arith.constant 0 : index
    %32 = vector.load %arg2[%31, %c0_24, %c0_25] : memref<50x1x128xf32, #tpu.memory_space<vmem>>, vector<1x1x128xf32>
    %33 = vector.shape_cast %32 : vector<1x1x128xf32> to vector<1x128xf32>
    %c4_26 = arith.constant 4 : index
    %c0_27 = arith.constant 0 : index
    %34 = vector.load %arg7[%c4_26, %c0_27] : memref<8x128xf32, #tpu.memory_space<vmem>>, vector<1x128xf32>
    tpu.vector_store %arg7[%c4_26, %c0_27], %33 {strides = array<i32>} : memref<8x128xf32, #tpu.memory_space<vmem>>, vector<1x128xf32>,
    %c5 = arith.constant 5 : index
    %35 = memref.load %arg1[%c5] : memref<8xi32, #tpu.memory_space<smem>>
    %c0_i32_28 = arith.constant 0 : i32
    %c49_i32_29 = arith.constant 49 : i32
    %36 = arith.maxsi %c0_i32_28, %35 : i32
    %37 = arith.minsi %c49_i32_29, %36 : i32
    %38 = arith.index_cast %37 : i32 to index
    %c0_30 = arith.constant 0 : index
    %c0_31 = arith.constant 0 : index
    %39 = vector.load %arg2[%38, %c0_30, %c0_31] : memref<50x1x128xf32, #tpu.memory_space<vmem>>, vector<1x1x128xf32>
    %40 = vector.shape_cast %39 : vector<1x1x128xf32> to vector<1x128xf32>
    %c5_32 = arith.constant 5 : index
    %c0_33 = arith.constant 0 : index
    %41 = vector.load %arg7[%c5_32, %c0_33] : memref<8x128xf32, #tpu.memory_space<vmem>>, vector<1x128xf32>
    tpu.vector_store %arg7[%c5_32, %c0_33], %40 {strides = array<i32>} : memref<8x128xf32, #tpu.memory_space<vmem>>, vector<1x128xf32>,
    %c6 = arith.constant 6 : index
    %42 = memref.load %arg1[%c6] : memref<8xi32, #tpu.memory_space<smem>>
    %c0_i32_34 = arith.constant 0 : i32
    %c49_i32_35 = arith.constant 49 : i32
    %43 = arith.maxsi %c0_i32_34, %42 : i32
    %44 = arith.minsi %c49_i32_35, %43 : i32
    %45 = arith.index_cast %44 : i32 to index
    %c0_36 = arith.constant 0 : index
    %c0_37 = arith.constant 0 : index
    %46 = vector.load %arg2[%45, %c0_36, %c0_37] : memref<50x1x128xf32, #tpu.memory_space<vmem>>, vector<1x1x128xf32>
    %47 = vector.shape_cast %46 : vector<1x1x128xf32> to vector<1x128xf32>
    %c6_38 = arith.constant 6 : index
    %c0_39 = arith.constant 0 : index
    %48 = vector.load %arg7[%c6_38, %c0_39] : memref<8x128xf32, #tpu.memory_space<vmem>>, vector<1x128xf32>
    tpu.vector_store %arg7[%c6_38, %c0_39], %47 {strides = array<i32>} : memref<8x128xf32, #tpu.memory_space<vmem>>, vector<1x128xf32>,
    %c7 = arith.constant 7 : index
    %49 = memref.load %arg1[%c7] : memref<8xi32, #tpu.memory_space<smem>>
    %c0_i32_40 = arith.constant 0 : i32
    %c49_i32_41 = arith.constant 49 : i32
    %50 = arith.maxsi %c0_i32_40, %49 : i32
    %51 = arith.minsi %c49_i32_41, %50 : i32
    %52 = arith.index_cast %51 : i32 to index
    %c0_42 = arith.constant 0 : index
    %c0_43 = arith.constant 0 : index
    %53 = vector.load %arg2[%52, %c0_42, %c0_43] : memref<50x1x128xf32, #tpu.memory_space<vmem>>, vector<1x1x128xf32>
    %54 = vector.shape_cast %53 : vector<1x1x128xf32> to vector<1x128xf32>
    %c7_44 = arith.constant 7 : index
    %c0_45 = arith.constant 0 : index
    %55 = vector.load %arg7[%c7_44, %c0_45] : memref<8x128xf32, #tpu.memory_space<vmem>>, vector<1x128xf32>
    tpu.vector_store %arg7[%c7_44, %c0_45], %54 {strides = array<i32>} : memref<8x128xf32, #tpu.memory_space<vmem>>, vector<1x128xf32>,
    %c0_46 = arith.constant 0 : index
    %c0_47 = arith.constant 0 : index
    %56 = vector.load %arg7[%c0_46, %c0_47] : memref<8x128xf32, #tpu.memory_space<vmem>>, vector<8x128xf32>
    %c0_48 = arith.constant 0 : index
    %c0_49 = arith.constant 0 : index
    %57 = vector.load %arg3[%c0_48, %c0_49] : memref<1x128xf32, #tpu.memory_space<vmem>>, vector<1x128xf32>
    %58 = vector.broadcast %57 : vector<1x128xf32> to vector<8x128xf32>
    %59 = arith.addf %56, %58 : vector<8x128xf32>
    %c0_50 = arith.constant 0 : index
    %c0_51 = arith.constant 0 : index
    %60 = vector.load %arg4[%c0_50, %c0_51] : memref<128x128xf32, #tpu.memory_space<vmem>>, vector<128x128xf32>
    %cst = arith.constant dense<0.000000e+00> : vector<8x128xf32>
    %61 = tpu.matmul %59, %60, %cst {dimension_numbers = #tpu.dot_dimension_numbers<[1], [0], [0], [1], [0, 0, 1, 1], [], []>} : vector<8x128xf32>, vector<128x128xf32>, vector<8x128xf32> -> vector<8x128xf32>
    %c0_52 = arith.constant 0 : index
    %c0_53 = arith.constant 0 : index
    %62 = vector.load %arg5[%c0_52, %c0_53] : memref<1x128xf32, #tpu.memory_space<vmem>>, vector<1x128xf32>
    %63 = vector.broadcast %62 : vector<1x128xf32> to vector<8x128xf32>
    %64 = arith.addf %61, %63 : vector<8x128xf32>
    %c0_54 = arith.constant 0 : index
    %c0_55 = arith.constant 0 : index
    %65 = vector.load %arg6[%c0_54, %c0_55] : memref<8x128xf32, #tpu.memory_space<vmem>>, vector<8x128xf32>
    tpu.vector_store %arg6[%c0_54, %c0_55], %64 {strides = array<i32>} : memref<8x128xf32, #tpu.memory_space<vmem>>, vector<8x128xf32>,
    return
  }
  func.func @transform_0(%arg0: i32, %arg1: memref<8xi32, #tpu.memory_space<smem>>) -> (i32, i32, i32) {
    %c0_i32 = arith.constant 0 : i32
    %c0_i32_0 = arith.constant 0 : i32
    %c0_i32_1 = arith.constant 0 : i32
    %c0_i32_2 = arith.constant 0 : i32
    return %c0_i32, %c0_i32_0, %c0_i32_1 : i32, i32, i32
  }
  func.func @transform_1(%arg0: i32, %arg1: memref<8xi32, #tpu.memory_space<smem>>) -> (i32, i32) {
    %c0_i32 = arith.constant 0 : i32
    %c0_i32_0 = arith.constant 0 : i32
    %c0_i32_1 = arith.constant 0 : i32
    return %c0_i32, %c0_i32_0 : i32, i32
  }
  func.func @transform_2(%arg0: i32, %arg1: memref<8xi32, #tpu.memory_space<smem>>) -> (i32, i32) {
    %c0_i32 = arith.constant 0 : i32
    %c0_i32_0 = arith.constant 0 : i32
    %c0_i32_1 = arith.constant 0 : i32
    return %c0_i32, %c0_i32_0 : i32, i32
  }
  func.func @transform_3(%arg0: i32, %arg1: memref<8xi32, #tpu.memory_space<smem>>) -> (i32, i32) {
    %c0_i32 = arith.constant 0 : i32
    %c0_i32_0 = arith.constant 0 : i32
    %c0_i32_1 = arith.constant 0 : i32
    return %c0_i32, %c0_i32_0 : i32, i32
  }
  func.func @transform_4(%arg0: i32, %arg1: memref<8xi32, #tpu.memory_space<smem>>) -> (i32, i32) {
    %c0_i32 = arith.constant 0 : i32
    %c0_i32_0 = arith.constant 0 : i32
    %c0_i32_1 = arith.constant 0 : i32
    return %c0_i32, %c0_i32_0 : i32, i32
  }
}

</mosaic_0001>

<llo_original>
// kernel: word2vec_forward_ids.1
$region0: #{word2vec_forward_ids.1}
  #allocation0 [shape = 'u32[]', space=smem, size = 0x4, offset = 0x4, fixed_abs, tag = 'smem constant byte address 0x4 - core index']
  #allocation1 [shape = 'u32[72,128]{1,0:T(1,128)}', space=vmem, size = 0x9000, scoped, tag = 'internal scratch']
  #allocation2 [shape = 'f32[8,128]{1,0:T(8,128)}', space=vmem, size = 0x1000, scoped, tag = 'scratch operand']
  #allocation3 [shape = 's32[1]{0}', space=sflag, size = 0x4, scoped, tag = 'scoped memory for word2vec_forward_ids.1']
  #allocation4 [shape = 'u8[512]{0}', space=smem, size = 0x200, scoped, tag = 'prefetched SMEM operand 0']
  %s0 = inlined_call_operand.hbm [shape: s32[8], index: 0, kind: input, shape index: {}]
  %s1 = inlined_call_operand.hbm [shape: f32[50,1,128], index: 1, kind: input, shape index: {}]
  %s2 = inlined_call_operand.vmem [shape: f32[1,128], index: 2, kind: input, shape index: {}]
  %s3 = inlined_call_operand.hbm [shape: f32[128,128], index: 3, kind: input, shape index: {}]
  %s4 = inlined_call_operand.vmem [shape: f32[1,128], index: 4, kind: input, shape index: {}]
  %s5 = inlined_call_operand.hbm [shape: f32[8,128], index: 5, kind: output, shape index: {}]
  %s6 = sld [smem:[#allocation0]]
  $region34: #{word2vec_forward_ids.1} parent=0
    _
  %s8 = ssub.s32 1, %s6
  %s9 = scalar_select 0, %s8, %s6
  %s11 = sshll.u32 %s0, 4
  %s12 = int_to_ptr.hbm [resolvable:$true] %s11
  %14 = dma.hbm_to_smem %s12, 16, [#allocation4], [#allocation3]
  %16 = dma.done [#allocation3], 16
  %17 = sfence
  $region1: #{word2vec_forward_ids.1} parent=0
    #allocation5 [shape = 'u8[25600]{0}', space=vmem, size = 0x6400, scoped, tag = 'input window, operand 1, single buffered']
    #allocation6 [shape = 's32[1]{0}', space=sflag, size = 0x4, scoped, tag = 'scoped memory for word2vec_forward_ids.1']
    #allocation7 [shape = 's32[1]{0}', space=sflag, size = 0x4, scoped, tag = 'scoped memory for word2vec_forward_ids.1']
    #allocation8 [shape = 'u8[65536]{0}', space=vmem, size = 0x10000, scoped, tag = 'input window, operand 3, single buffered']
    #allocation9 [shape = 's32[1]{0}', space=sflag, size = 0x4, scoped, tag = 'scoped memory for word2vec_forward_ids.1']
    #allocation10 [shape = 'u8[4096]{0}', space=vmem, size = 0x1000, scoped, tag = 'output window, operand 0, single buffered']
    %18 = vsyncpa [#allocation6], 0
    %19 = vsyncpa [#allocation9], 0
    %20 = vsyncpa [#allocation7], 0
    // Predicated region
    $region2: #{word2vec_forward_ids.1} parent=1 // pred_check
      _
    $region3: #{word2vec_forward_ids.1} parent=1 // pred_check_branch
      %22 = sbr.rel (0) target = $region5
    $region4: #{word2vec_forward_ids.1} parent=1 // pred_region
      %24 = vsyncadd [#allocation6], 0
      %s25 = sshll.u32 %s1, 4
      %s26 = int_to_ptr.hbm [resolvable:$true] %s25
      %s27 = sshll.u32 [#allocation5], 4
      %s28 = int_to_ptr.vmem [resolvable:$true] %s27
      %33 = dma.hbm_to_vmem [thread:$0]  %s26, 800, %s28, [#allocation6], 16, 16, 1
    $region5: #{word2vec_forward_ids.1} parent=1 // pred_fallthru
      _
    // Predicated region
    $region6: #{word2vec_forward_ids.1} parent=1 // pred_check
      _
    $region7: #{word2vec_forward_ids.1} parent=1 // pred_check_branch
      %35 = sbr.rel (0) target = $region9
    $region8: #{word2vec_forward_ids.1} parent=1 // pred_region
      _
    $region9: #{word2vec_forward_ids.1} parent=1 // pred_fallthru
      _
    // Predicated region
    $region10: #{word2vec_forward_ids.1} parent=1 // pred_check
      _
    $region11: #{word2vec_forward_ids.1} parent=1 // pred_check_branch
      %37 = sbr.rel (0) target = $region13
    $region12: #{word2vec_forward_ids.1} parent=1 // pred_region
      %39 = vsyncadd [#allocation9], 0
      %s40 = sshll.u32 %s3, 4
      %s41 = int_to_ptr.hbm [resolvable:$true] %s40
      %s42 = sshll.u32 [#allocation8], 4
      %s43 = int_to_ptr.vmem [resolvable:$true] %s42
      %48 = dma.hbm_to_vmem [thread:$0]  %s41, 2048, %s43, [#allocation9], 128, 128, 8
    $region13: #{word2vec_forward_ids.1} parent=1 // pred_fallthru
      _
    // Predicated region
    $region14: #{word2vec_forward_ids.1} parent=1 // pred_check
      _
    $region15: #{word2vec_forward_ids.1} parent=1 // pred_check_branch
      %50 = sbr.rel (0) target = $region17
    $region16: #{word2vec_forward_ids.1} parent=1 // pred_region
      _
    $region17: #{word2vec_forward_ids.1} parent=1 // pred_fallthru
      _
    // Predicated region
    $region18: #{word2vec_forward_ids.1} parent=1 // pred_check
      _
    $region19: #{word2vec_forward_ids.1} parent=1 // pred_check_branch
      %52 = sbr.rel (0) target = $region21
    $region20: #{word2vec_forward_ids.1} parent=1 // pred_region
      %54 = dma.done [#allocation6], 800
    $region21: #{word2vec_forward_ids.1} parent=1 // pred_fallthru
      _
    // Predicated region
    $region22: #{word2vec_forward_ids.1} parent=1 // pred_check
      _
    $region23: #{word2vec_forward_ids.1} parent=1 // pred_check_branch
      %56 = sbr.rel (0) target = $region25
    $region24: #{word2vec_forward_ids.1} parent=1 // pred_region
      %58 = dma.done [#allocation9], 2048
    $region25: #{word2vec_forward_ids.1} parent=1 // pred_fallthru
      _
    %s59 = sld [smem:[#allocation4]]
    %p60 = scmp.gt.s32.totalorder %s59, 0
    %s61 = scalar_select %p60, %s59, 0
    %p62 = scmp.lt.s32.totalorder %s61, 49
    %s63 = scalar_select %p62, %s61, 49
    %s64 = scalar_lea.vmem [#allocation5], %s63
    %v65 = vld [vmem:[%s64] sm:$0x1]
    %66 = vst [vmem:[#allocation2] sm:$0x1] %v65
    %s67 = sld [smem:[#allocation4 + $0x1]]
    %p68 = scmp.gt.s32.totalorder %s67, 0
    %s69 = scalar_select %p68, %s67, 0
    %p70 = scmp.lt.s32.totalorder %s69, 49
    %s71 = scalar_select %p70, %s69, 49
    %s72 = scalar_lea.vmem [#allocation5], %s71
    %v73 = vld [vmem:[%s72] sm:$0x1]
    %74 = vst [vmem:[#allocation2 + $0x1] sm:$0x1] %v73
    %s75 = sld [smem:[#allocation4 + $0x2]]
    %p76 = scmp.gt.s32.totalorder %s75, 0
    %s77 = scalar_select %p76, %s75, 0
    %p78 = scmp.lt.s32.totalorder %s77, 49
    %s79 = scalar_select %p78, %s77, 49
    %s80 = scalar_lea.vmem [#allocation5], %s79
    %v81 = vld [vmem:[%s80] sm:$0x1]
    %82 = vst [vmem:[#allocation2 + $0x2] sm:$0x1] %v81
    %s83 = sld [smem:[#allocation4 + $0x3]]
    %p84 = scmp.gt.s32.totalorder %s83, 0
    %s85 = scalar_select %p84, %s83, 0
    %p86 = scmp.lt.s32.totalorder %s85, 49
    %s87 = scalar_select %p86, %s85, 49
    %s88 = scalar_lea.vmem [#allocation5], %s87
    %v89 = vld [vmem:[%s88] sm:$0x1]
    %90 = vst [vmem:[#allocation2 + $0x3] sm:$0x1] %v89
    %s91 = sld [smem:[#allocation4 + $0x4]]
    %p92 = scmp.gt.s32.totalorder %s91, 0
    %s93 = scalar_select %p92, %s91, 0
    %p94 = scmp.lt.s32.totalorder %s93, 49
    %s95 = scalar_select %p94, %s93, 49
    %s96 = scalar_lea.vmem [#allocation5], %s95
    %v97 = vld [vmem:[%s96] sm:$0x1]
    %98 = vst [vmem:[#allocation2 + $0x4] sm:$0x1] %v97
    %s99 = sld [smem:[#allocation4 + $0x5]]
    %p100 = scmp.gt.s32.totalorder %s99, 0
    %s101 = scalar_select %p100, %s99, 0
    %p102 = scmp.lt.s32.totalorder %s101, 49
    %s103 = scalar_select %p102, %s101, 49
    %s104 = scalar_lea.vmem [#allocation5], %s103
    %v105 = vld [vmem:[%s104] sm:$0x1]
    %106 = vst [vmem:[#allocation2 + $0x5] sm:$0x1] %v105
    %s107 = sld [smem:[#allocation4 + $0x6]]
    %p108 = scmp.gt.s32.totalorder %s107, 0
    %s109 = scalar_select %p108, %s107, 0
    %p110 = scmp.lt.s32.totalorder %s109, 49
    %s111 = scalar_select %p110, %s109, 49
    %s112 = scalar_lea.vmem [#allocation5], %s111
    %v113 = vld [vmem:[%s112] sm:$0x1]
    %114 = vst [vmem:[#allocation2 + $0x6] sm:$0x1] %v113
    %s115 = sld [smem:[#allocation4 + $0x7]]
    %p116 = scmp.gt.s32.totalorder %s115, 0
    %s117 = scalar_select %p116, %s115, 0
    %p118 = scmp.lt.s32.totalorder %s117, 49
    %s119 = scalar_select %p118, %s117, 49
    %s120 = scalar_lea.vmem [#allocation5], %s119
    %v121 = vld [vmem:[%s120] sm:$0x1]
    %122 = vst [vmem:[#allocation2 + $0x7] sm:$0x1] %v121
    %v123 = vld [vmem:[#allocation2] sm:$0xff]
    %v124 = vld [vmem:[%s2] sm:$0x1]
    %v126 = vperm.slane %v124, 0
    %v128 = vadd.f32 %v123, %v126
    %v129 = vld [vmem:[#allocation8] sm:$0xff]
    %v130 = vld [vmem:[#allocation8 + $0x8] sm:$0xff]
    %v131 = vld [vmem:[#allocation8 + $0x10] sm:$0xff]
    %v132 = vld [vmem:[#allocation8 + $0x18] sm:$0xff]
    %v133 = vld [vmem:[#allocation8 + $0x20] sm:$0xff]
    %v134 = vld [vmem:[#allocation8 + $0x28] sm:$0xff]
    %v135 = vld [vmem:[#allocation8 + $0x30] sm:$0xff]
    %v136 = vld [vmem:[#allocation8 + $0x38] sm:$0xff]
    %v137 = vld [vmem:[#allocation8 + $0x40] sm:$0xff]
    %v138 = vld [vmem:[#allocation8 + $0x48] sm:$0xff]
    %v139 = vld [vmem:[#allocation8 + $0x50] sm:$0xff]
    %v140 = vld [vmem:[#allocation8 + $0x58] sm:$0xff]
    %v141 = vld [vmem:[#allocation8 + $0x60] sm:$0xff]
    %v142 = vld [vmem:[#allocation8 + $0x68] sm:$0xff]
    %v143 = vld [vmem:[#allocation8 + $0x70] sm:$0xff]
    %v144 = vld [vmem:[#allocation8 + $0x78] sm:$0xff]
    %v145 = vld [vmem:[%s4] sm:$0x1]
    %v147 = vperm.slane %v145, 0
    %149 = vmatpush.msra.mxu0 %v144
    %150 = vmatpush.msra.mxu0 %v143
    %151 = vmatpush.msra.mxu0 %v142
    %152 = vmatpush.msra.mxu0 %v141
    %153 = vmatpush.msra.mxu0 %v140
    %154 = vmatpush.msra.mxu0 %v139
    %155 = vmatpush.msra.mxu0 %v138
    %156 = vmatpush.msra.mxu0 %v137
    %157 = vmatpush.msra.mxu0 %v136
    %158 = vmatpush.msra.mxu0 %v135
    %159 = vmatpush.msra.mxu0 %v134
    %160 = vmatpush.msra.mxu0 %v133
    %161 = vmatpush.msra.mxu0 %v132
    %162 = vmatpush.msra.mxu0 %v131
    %163 = vmatpush.msra.mxu0 %v130
    %164 = vmatpush.msra.mxu0 %v129
    %165 = vmatmul.f32.gmra.mxu0 %v128
    %v166 = vpop.f32.mrf.mxu0
    %v167 = vadd.f32 %v147, %v166
    %168 = vdwg.mxu0
    %169 = vst [vmem:[#allocation10] sm:$0xff] %v167
    // Predicated region
    $region26: #{word2vec_forward_ids.1} parent=1 // pred_check
      _
    $region27: #{word2vec_forward_ids.1} parent=1 // pred_check_branch
      %171 = sbr.rel (0) target = $region29
    $region28: #{word2vec_forward_ids.1} parent=1 // pred_region
      %173 = vsyncadd [#allocation7], 0
      %s175 = sshll.u32 [#allocation10], 4
      %s176 = int_to_ptr.vmem [resolvable:$true] %s175
      %s177 = sshll.u32 %s5, 4
      %s178 = int_to_ptr.hbm [resolvable:$true] %s177
      %180 = dma.vmem_to_hbm [thread:$0]  %s176, 128, %s178, [#allocation7]
    $region29: #{word2vec_forward_ids.1} parent=1 // pred_fallthru
      _
    // Predicated region
    $region30: #{word2vec_forward_ids.1} parent=1 // pred_check
      _
    $region31: #{word2vec_forward_ids.1} parent=1 // pred_check_branch
      %182 = sbr.rel (0) target = $region33
    $region32: #{word2vec_forward_ids.1} parent=1 // pred_region
      %184 = dma.done [#allocation7], 128
    $region33: #{word2vec_forward_ids.1} parent=1 // pred_fallthru
      _
    %185 = vsyncpa [#allocation6], 1
    %186 = vsyncpa [#allocation9], 1
    %187 = vsyncpa [#allocation7], 1

</llo_original>
